<compile_context>
chip_gen: v7x
topology: tpu7x:2x2x1
jax: 0.10.0
libtpu: 0.0.40
codegen_flags: <defaults>
</compile_context>

<pallas_src>
import functools

import jax
import jax.numpy as jnp
from jax.experimental import pallas as pl
from jax.experimental.pallas import tpu as pltpu


def _round_up(n, m):
    return -(-n // m) * m


def _make_kernel(meta):
    """Build the kernel closure over the (static) layer sizes / slab offsets."""
    I, E, NL = meta["I"], meta["E"], meta["NL"]
    N, H, K = meta["N"], meta["H"], meta["K"]          # N chain layers, H = E+1, K = I+E+NL+1
    r1, r2 = meta["r1"], meta["r2"]                    # slab row offsets of Wall / Wp sections
    n_ln = E + NL                                      # rows of the fused [Wl;Wnl] block
    n_all = (N + 1) * H                                # rows of the fused base-weight block

    def kernel(x_ref, slab_ref, o_ref):
        f32 = jnp.float32
        X = x_ref[...].astype(f32)                     # (I, tb)   batch in lanes
        ones = jnp.ones((1, X.shape[1]), f32)          # constant-1 feature row (bias fold)
        x_aug = jnp.concatenate([X, ones], axis=0)     # (I+1, tb)

        # Fused linear + nonlinear embeddings: one matmul for both heads.
        wln = slab_ref[0:n_ln, 0:I + 1]                # (E+NL, I+1)  [Wl|bl ; Wnl|bnl]
        lin_nl = jnp.dot(wln, x_aug, preferred_element_type=f32)   # (E+NL, tb)
        x_lin = lin_nl[0:E]                            # (E, tb)
        x_nl = jnp.tanh(lin_nl[E:n_ln])                # (NL, tb)   EUP

        # base_aug matches the weight column order [x | x_lin | x_nl | 1].
        base = jnp.concatenate([X, x_lin, x_nl, ones], axis=0)     # (K, tb)

        # ONE stacked matmul: layer-0 output and every chain layer's base term.
        wall = slab_ref[r1:r1 + n_all, 0:K]            # ((N+1)*H, K)
        big = jnp.dot(wall, base, preferred_element_type=f32)      # ((N+1)*H, tb)

        # Recurrent ("prev") weights for the serial chain, loaded once.
        wp_all = slab_ref[r2:r2 + N * H, 0:H]          # (N*H, H)

        prev = big[0:H]                                # h0, (H, tb)
        out_rows = []
        for i in range(N):                             # static unroll; N is small
            h = big[(i + 1) * H:(i + 2) * H] + jnp.dot(
                wp_all[i * H:(i + 1) * H], prev, preferred_element_type=f32)
            out_rows.append(h[H - 1:H, :])             # last feature = one sublane row
            prev = h

        # (n_out, tb): lane-dense, single unmasked store.
        o_ref[...] = jnp.concatenate(out_rows, axis=0).astype(o_ref.dtype)

    return kernel


def prepare_params(params, input_size, embedded_vector_size, non_linear_vector_size):
    """One-time weight prep: fold biases, fuse layer-invariant weights, pack ONE slab.

    Slab layout (rows, K) with K = I + E + NL + 1, sections 8-row aligned:
      [0      : E+NL )  , 0:I+1 ->  [Wl | bl ; Wnl | bnl]            (multiplies x_aug)
      [r1     : r1+(N+1)H), 0:K  ->  [W0|b0 ; Wb_1|b_1 ; ... ; Wb_N|b_N]  (multiplies base_aug)
      [r2     : r2+N*H ), 0:H  ->  [Wp_1 ; ... ; Wp_N]               (multiplies prev h)
    """
    I, E, NL = input_size, embedded_vector_size, non_linear_vector_size
    H = E + 1
    N = params["W"].shape[0]
    K = I + E + NL + 1

    # Linear / nonlinear embeddings with biases folded as an extra column.
    wl_aug = jnp.concatenate([params["wl"], params["bl"][:, None]], axis=1)     # (E, I+1)
    wnl_aug = jnp.concatenate([params["wnl"], params["bnl"][:, None]], axis=1)  # (NL, I+1)
    wln = jnp.concatenate([wl_aug, wnl_aug], axis=0)                            # (E+NL, I+1)

    # Layer 0 and the base-input part of every chain layer, biases folded,
    # stacked along the output dim so ONE matmul covers them all.
    w0_aug = jnp.concatenate([params["W0"], params["b0"][:, None]], axis=1)     # (H, K)
    wb = params["W"][:, :, :I + E + NL]                                         # (N, H, I+E+NL)
    wb_aug = jnp.concatenate([wb, params["b"][:, :, None]], axis=2)             # (N, H, K)
    wall = jnp.concatenate([w0_aug, wb_aug.reshape(N * H, K)], axis=0)          # ((N+1)H, K)

    # The recurrent part (columns acting on the previous layer's output).
    wp = params["W"][:, :, I + E + NL:].reshape(N * H, H)                       # (N*H, H)

    r1 = _round_up(wln.shape[0], 8)
    r2 = r1 + _round_up(wall.shape[0], 8)
    total_rows = r2 + _round_up(wp.shape[0], 8)

    slab = jnp.zeros((total_rows, K), jnp.float32)
    slab = slab.at[0:wln.shape[0], 0:I + 1].set(wln)
    slab = slab.at[r1:r1 + wall.shape[0], 0:K].set(wall)
    slab = slab.at[r2:r2 + wp.shape[0], 0:H].set(wp)

    meta = dict(I=I, E=E, NL=NL, N=N, H=H, K=K, r1=r1, r2=r2)
    return {"slab": slab, "meta": meta}


def simple_mlp_forward(x, prep, *, lane_tile=2048):
    """x: (B, input_size) float32. prep: output of prepare_params()."""
    B, in_size = x.shape
    slab, meta = prep["slab"], prep["meta"]
    assert in_size == meta["I"]
    n_out = meta["N"]

    # Feature-major / batch-in-lanes.
    xT = x.T                                            # (I, B)

    # Batch-lane tile: full batch if small, else a large lane-dense tile.
    tb = B if B <= lane_tile else lane_tile
    # v7x: make sure the grid has >=2 steps (so both TensorCores work) whenever
    # the batch is big enough that splitting it is not pure per-step overhead.
    if B >= 256 and pl.cdiv(B, tb) < 2:
        tb = _round_up(pl.cdiv(B, 2), 128)
    grid = (pl.cdiv(B, tb),)

    kernel = _make_kernel(meta)
    outT = pl.pallas_call(
        kernel,
        out_shape=jax.ShapeDtypeStruct((n_out, B), x.dtype),
        grid=grid,
        in_specs=[
            pl.BlockSpec((meta["I"], tb), lambda i: (0, i)),   # x: tiled over lanes (batch)
            pl.BlockSpec(slab.shape, lambda i: (0, 0)),        # one resident weight slab
        ],
        out_specs=pl.BlockSpec((n_out, tb), lambda i: (0, i)), # lane-dense output
        compiler_params=pltpu.CompilerParams(
            dimension_semantics=("parallel",),                 # v7x: split batch over 2 TCs
        ),
    )(xT, slab)

    # Back to (B, n_out); PyTorch: torch.cat(outputs, dim=-1).squeeze()
    # (with B == 1 this also drops the batch dim, matching the module).
    return jnp.squeeze(outT.T)


def init_params(key, input_size, output_size, embedded_vector_size,
                non_linear_vector_size):
    """Deterministic init mirroring nn.Linear default (U(-k, k), k=1/sqrt(in))."""
    E, NL = embedded_vector_size, non_linear_vector_size

    def linear(k, in_f, out_f):
        kw, kb = jax.random.split(k)
        bound = 1.0 / in_f ** 0.5
        w = jax.random.uniform(kw, (out_f, in_f), jnp.float32, -bound, bound)
        b = jax.random.uniform(kb, (out_f,), jnp.float32, -bound, bound)
        return w, b

    keys = jax.random.split(key, 3 + output_size)
    params = {}
    params["wnl"], params["bnl"] = linear(keys[0], input_size, NL)
    params["wl"], params["bl"] = linear(keys[1], input_size, E)
    params["W0"], params["b0"] = linear(keys[2], NL + input_size + E, E + 1)
    Ws, bs = [], []
    for i in range(output_size):
        w, b = linear(keys[3 + i], NL + input_size + 2 * E + 1, E + 1)
        Ws.append(w)
        bs.append(b)
    params["W"] = jnp.stack(Ws)      # (output_size, E+1, in_total)
    params["b"] = jnp.stack(bs)      # (output_size, E+1)
    return params


def _reference(x, params):
    """Pure-JAX mirror of the PyTorch forward."""
    x_lin = x @ params["wl"].T + params["bl"]
    x_nl = jnp.tanh(x @ params["wnl"].T + params["bnl"])
    base = jnp.concatenate([x, x_lin, x_nl], axis=-1)
    h = base @ params["W0"].T + params["b0"]
    outs = []
    for i in range(params["W"].shape[0]):
        h = jnp.concatenate([base, h], axis=-1) @ params["W"][i].T + params["b"][i]
        outs.append(h[:, -1:])
    return jnp.squeeze(jnp.concatenate(outs, axis=-1))


if __name__ == "__main__":
    input_size = 4
    output_size = 6
    embedded_vector_size = 8
    non_linear_vector_size = 16
    batch = 8

    key = jax.random.PRNGKey(0)
    key, kx = jax.random.split(key)
    x = jax.random.normal(kx, (batch, input_size), dtype=jnp.float32)
    params = init_params(key, input_size, output_size,
                         embedded_vector_size, non_linear_vector_size)
    prep = prepare_params(params, input_size, embedded_vector_size,
                          non_linear_vector_size)

    out = simple_mlp_forward(x, prep)
    out = jax.block_until_ready(out)

    ref = _reference(x, params)
    assert out.shape == ref.shape, (out.shape, ref.shape)
    assert jnp.allclose(out, ref, atol=1e-4, rtol=1e-4), "mismatch vs reference"

    print("KERNEL_OK")
</pallas_src>

<mosaic_0001>
module attributes {stable_mosaic.version = 11 : i64} {
  func.func @kernel(%arg0: i32, %arg1: memref<4x8xf32, #tpu.memory_space<vmem>>, %arg2: memref<144x29xf32, #tpu.memory_space<vmem>>, %arg3: memref<6x8xf32, #tpu.memory_space<vmem>>) attributes {dimension_semantics = [#tpu.dimension_semantics<parallel>], iteration_bounds = array<i64: 1>, scalar_prefetch = 0 : i64, scratch_operands = 0 : i64, tpu.core_type = #tpu.core_type<tc>, window_params = [{transform_indices = @transform_0, window_bounds = array<i64: 4, 8>}, {pipeline_mode = #tpu.pipeline_mode<synchronous>, transform_indices = @transform_1, window_bounds = array<i64: 144, 29>}, {transform_indices = @transform_2, window_bounds = array<i64: 6, 8>}]} {
    %c0 = arith.constant 0 : index
    %c0_0 = arith.constant 0 : index
    %0 = vector.load %arg1[%c0, %c0_0] : memref<4x8xf32, #tpu.memory_space<vmem>>, vector<4x8xf32>
    %cst = arith.constant 1.000000e+00 : f32
    %1 = vector.broadcast %cst : f32 to vector<1x8xf32>
    %2 = tpu.concatenate %0, %1 in 0 : vector<4x8xf32>, vector<1x8xf32> -> vector<5x8xf32>
    %c0_1 = arith.constant 0 : index
    %c0_2 = arith.constant 0 : index
    %3 = vector.load %arg2[%c0_1, %c0_2] : memref<144x29xf32, #tpu.memory_space<vmem>>, vector<24x5xf32>
    %cst_3 = arith.constant dense<0.000000e+00> : vector<24x8xf32>
    %4 = tpu.matmul %3, %2, %cst_3 {dimension_numbers = #tpu.dot_dimension_numbers<[1], [0], [0], [1], [0, 0, 1, 1], [], []>} : vector<24x5xf32>, vector<5x8xf32>, vector<24x8xf32> -> vector<24x8xf32>
    %5 = vector.extract_strided_slice %4 {offsets = [0, 0], sizes = [8, 8], strides = [1, 1]} : vector<24x8xf32> to vector<8x8xf32>
    %6 = vector.extract_strided_slice %4 {offsets = [8, 0], sizes = [16, 8], strides = [1, 1]} : vector<24x8xf32> to vector<16x8xf32>
    %7 = math.tanh %6 : vector<16x8xf32>
    %8 = tpu.concatenate %0, %5, %7, %1 in 0 : vector<4x8xf32>, vector<8x8xf32>, vector<16x8xf32>, vector<1x8xf32> -> vector<29x8xf32>
    %c24 = arith.constant 24 : index
    %c0_4 = arith.constant 0 : index
    %9 = vector.load %arg2[%c24, %c0_4] : memref<144x29xf32, #tpu.memory_space<vmem>>, vector<63x29xf32>
    %cst_5 = arith.constant dense<0.000000e+00> : vector<63x8xf32>
    %10 = tpu.matmul %9, %8, %cst_5 {dimension_numbers = #tpu.dot_dimension_numbers<[1], [0], [0], [1], [0, 0, 1, 1], [], []>} : vector<63x29xf32>, vector<29x8xf32>, vector<63x8xf32> -> vector<63x8xf32>
    %c88 = arith.constant 88 : index
    %c0_6 = arith.constant 0 : index
    %11 = vector.load %arg2[%c88, %c0_6] : memref<144x29xf32, #tpu.memory_space<vmem>>, vector<54x9xf32>
    %12 = vector.extract_strided_slice %10 {offsets = [0, 0], sizes = [9, 8], strides = [1, 1]} : vector<63x8xf32> to vector<9x8xf32>
    %13 = vector.extract_strided_slice %10 {offsets = [9, 0], sizes = [9, 8], strides = [1, 1]} : vector<63x8xf32> to vector<9x8xf32>
    %14 = vector.extract_strided_slice %11 {offsets = [0, 0], sizes = [9, 9], strides = [1, 1]} : vector<54x9xf32> to vector<9x9xf32>
    %cst_7 = arith.constant dense<0.000000e+00> : vector<9x8xf32>
    %15 = tpu.matmul %14, %12, %cst_7 {dimension_numbers = #tpu.dot_dimension_numbers<[1], [0], [0], [1], [0, 0, 1, 1], [], []>} : vector<9x9xf32>, vector<9x8xf32>, vector<9x8xf32> -> vector<9x8xf32>
    %16 = arith.addf %13, %15 : vector<9x8xf32>
    %17 = vector.extract_strided_slice %16 {offsets = [8, 0], sizes = [1, 8], strides = [1, 1]} : vector<9x8xf32> to vector<1x8xf32>
    %18 = vector.extract_strided_slice %10 {offsets = [18, 0], sizes = [9, 8], strides = [1, 1]} : vector<63x8xf32> to vector<9x8xf32>
    %19 = vector.extract_strided_slice %11 {offsets = [9, 0], sizes = [9, 9], strides = [1, 1]} : vector<54x9xf32> to vector<9x9xf32>
    %cst_8 = arith.constant dense<0.000000e+00> : vector<9x8xf32>
    %20 = tpu.matmul %19, %16, %cst_8 {dimension_numbers = #tpu.dot_dimension_numbers<[1], [0], [0], [1], [0, 0, 1, 1], [], []>} : vector<9x9xf32>, vector<9x8xf32>, vector<9x8xf32> -> vector<9x8xf32>
    %21 = arith.addf %18, %20 : vector<9x8xf32>
    %22 = vector.extract_strided_slice %21 {offsets = [8, 0], sizes = [1, 8], strides = [1, 1]} : vector<9x8xf32> to vector<1x8xf32>
    %23 = vector.extract_strided_slice %10 {offsets = [27, 0], sizes = [9, 8], strides = [1, 1]} : vector<63x8xf32> to vector<9x8xf32>
    %24 = vector.extract_strided_slice %11 {offsets = [18, 0], sizes = [9, 9], strides = [1, 1]} : vector<54x9xf32> to vector<9x9xf32>
    %cst_9 = arith.constant dense<0.000000e+00> : vector<9x8xf32>
    %25 = tpu.matmul %24, %21, %cst_9 {dimension_numbers = #tpu.dot_dimension_numbers<[1], [0], [0], [1], [0, 0, 1, 1], [], []>} : vector<9x9xf32>, vector<9x8xf32>, vector<9x8xf32> -> vector<9x8xf32>
    %26 = arith.addf %23, %25 : vector<9x8xf32>
    %27 = vector.extract_strided_slice %26 {offsets = [8, 0], sizes = [1, 8], strides = [1, 1]} : vector<9x8xf32> to vector<1x8xf32>
    %28 = vector.extract_strided_slice %10 {offsets = [36, 0], sizes = [9, 8], strides = [1, 1]} : vector<63x8xf32> to vector<9x8xf32>
    %29 = vector.extract_strided_slice %11 {offsets = [27, 0], sizes = [9, 9], strides = [1, 1]} : vector<54x9xf32> to vector<9x9xf32>
    %cst_10 = arith.constant dense<0.000000e+00> : vector<9x8xf32>
    %30 = tpu.matmul %29, %26, %cst_10 {dimension_numbers = #tpu.dot_dimension_numbers<[1], [0], [0], [1], [0, 0, 1, 1], [], []>} : vector<9x9xf32>, vector<9x8xf32>, vector<9x8xf32> -> vector<9x8xf32>
    %31 = arith.addf %28, %30 : vector<9x8xf32>
    %32 = vector.extract_strided_slice %31 {offsets = [8, 0], sizes = [1, 8], strides = [1, 1]} : vector<9x8xf32> to vector<1x8xf32>
    %33 = vector.extract_strided_slice %10 {offsets = [45, 0], sizes = [9, 8], strides = [1, 1]} : vector<63x8xf32> to vector<9x8xf32>
    %34 = vector.extract_strided_slice %11 {offsets = [36, 0], sizes = [9, 9], strides = [1, 1]} : vector<54x9xf32> to vector<9x9xf32>
    %cst_11 = arith.constant dense<0.000000e+00> : vector<9x8xf32>
    %35 = tpu.matmul %34, %31, %cst_11 {dimension_numbers = #tpu.dot_dimension_numbers<[1], [0], [0], [1], [0, 0, 1, 1], [], []>} : vector<9x9xf32>, vector<9x8xf32>, vector<9x8xf32> -> vector<9x8xf32>
    %36 = arith.addf %33, %35 : vector<9x8xf32>
    %37 = vector.extract_strided_slice %36 {offsets = [8, 0], sizes = [1, 8], strides = [1, 1]} : vector<9x8xf32> to vector<1x8xf32>
    %38 = vector.extract_strided_slice %10 {offsets = [54, 0], sizes = [9, 8], strides = [1, 1]} : vector<63x8xf32> to vector<9x8xf32>
    %39 = vector.extract_strided_slice %11 {offsets = [45, 0], sizes = [9, 9], strides = [1, 1]} : vector<54x9xf32> to vector<9x9xf32>
    %cst_12 = arith.constant dense<0.000000e+00> : vector<9x8xf32>
    %40 = tpu.matmul %39, %36, %cst_12 {dimension_numbers = #tpu.dot_dimension_numbers<[1], [0], [0], [1], [0, 0, 1, 1], [], []>} : vector<9x9xf32>, vector<9x8xf32>, vector<9x8xf32> -> vector<9x8xf32>
    %41 = arith.addf %38, %40 : vector<9x8xf32>
    %42 = vector.extract_strided_slice %41 {offsets = [8, 0], sizes = [1, 8], strides = [1, 1]} : vector<9x8xf32> to vector<1x8xf32>
    %43 = tpu.concatenate %17, %22, %27, %32, %37, %42 in 0 : vector<1x8xf32>, vector<1x8xf32>, vector<1x8xf32>, vector<1x8xf32>, vector<1x8xf32>, vector<1x8xf32> -> vector<6x8xf32>
    %c0_13 = arith.constant 0 : index
    %c0_14 = arith.constant 0 : index
    %44 = vector.load %arg3[%c0_13, %c0_14] : memref<6x8xf32, #tpu.memory_space<vmem>>, vector<6x8xf32>
    tpu.vector_store %arg3[%c0_13, %c0_14], %43 {strides = array<i32>} : memref<6x8xf32, #tpu.memory_space<vmem>>, vector<6x8xf32>,
    return
  }
  func.func @transform_0(%arg0: i32) -> (i32, i32) {
    %c0_i32 = arith.constant 0 : i32
    %c0_i32_0 = arith.constant 0 : i32
    return %c0_i32, %arg0 : i32, i32
  }
  func.func @transform_1(%arg0: i32) -> (i32, i32) {
    %c0_i32 = arith.constant 0 : i32
    %c0_i32_0 = arith.constant 0 : i32
    %c0_i32_1 = arith.constant 0 : i32
    return %c0_i32, %c0_i32_0 : i32, i32
  }
  func.func @transform_2(%arg0: i32) -> (i32, i32) {
    %c0_i32 = arith.constant 0 : i32
    %c0_i32_0 = arith.constant 0 : i32
    return %c0_i32, %arg0 : i32, i32
  }
}

</mosaic_0001>

<llo_original>
// kernel: tpu_custom_call.1
$region0: #{tpu_custom_call.1}
  #allocation0 [shape = 'u32[]', space=smem, size = 0x4, offset = 0x4, fixed_abs, tag = 'smem constant byte address 0x4 - core index']
  #allocation1 [shape = 'u32[144,128]{1,0:T(1,128)}', space=vmem, size = 0x12000, scoped, tag = 'internal scratch']
  %s0 = inlined_call_operand.vmem [shape: f32[4,8], index: 0, kind: input, shape index: {}]
  %s1 = inlined_call_operand.vmem [shape: f32[144,29], index: 1, kind: input, shape index: {}]
  %s2 = inlined_call_operand.hbm [shape: f32[6,8], index: 2, kind: output, shape index: {}]
  %s3 = sld [smem:[#allocation0]]
  $region18: #{tpu_custom_call.1} parent=0
    _
  %s5 = ssub.s32 1, %s3
  %s6 = scalar_select 0, %s5, %s3
  $region1: #{tpu_custom_call.1} parent=0
    #allocation2 [shape = 'u8[4096]{0}', space=vmem, size = 0x1000, scoped, tag = 'output window, operand 0, single buffered']
    #allocation3 [shape = 's32[1]{0}', space=sflag, size = 0x4, scoped, tag = 'scoped memory for tpu_custom_call.1']
    %7 = vsyncpa [#allocation3], 0
    // Predicated region
    $region2: #{tpu_custom_call.1} parent=1 // pred_check
      _
    $region3: #{tpu_custom_call.1} parent=1 // pred_check_branch
      %9 = sbr.rel (0) target = $region5
    $region4: #{tpu_custom_call.1} parent=1 // pred_region
      _
    $region5: #{tpu_custom_call.1} parent=1 // pred_fallthru
      _
    // Predicated region
    $region6: #{tpu_custom_call.1} parent=1 // pred_check
      _
    $region7: #{tpu_custom_call.1} parent=1 // pred_check_branch
      %11 = sbr.rel (0) target = $region9
    $region8: #{tpu_custom_call.1} parent=1 // pred_region
      _
    $region9: #{tpu_custom_call.1} parent=1 // pred_fallthru
      _
    %v12 = vld [vmem:[%s0] sm:$0xf]
    %vm13 = vcmask 1043456
    %v14 = vsel %vm13, %v12, 1.0
    %v15 = vld [vmem:[%s1] sm:$0xff]
    %v16 = vld [vmem:[%s1 + $0x8] sm:$0xff]
    %v17 = vld [vmem:[%s1 + $0x10] sm:$0xff]
    %vm18 = vcmask 39936
    %v20 = vsel %vm18, %v15, 0
    %v23 = vsel %vm18, %v16, 0
    %v26 = vsel %vm18, %v17, 0
    %vm28 = vcmask 1044480
    %v30 = vsel %vm28, %v14, 0
    %32 = vmatprep.subr.mxu0 0.0
    %33 = vmatpush1.msra.mxu0 %v30
    %34 = vmatprep.subr.mxu0 0.0
    %35 = vmatpush1.msra.mxu0 0.0
    %36 = vmatprep.subr.mxu0 0.0
    %37 = vmatpush1.msra.mxu0 0.0
    %38 = vmatprep.subr.mxu0 0.0
    %39 = vmatpush1.msra.mxu0 0.0
    %40 = vmatprep.subr.mxu0 0.0
    %41 = vmatpush1.msra.mxu0 0.0
    %42 = vmatprep.subr.mxu0 0.0
    %43 = vmatpush1.msra.mxu0 0.0
    %44 = vmatprep.subr.mxu0 0.0
    %45 = vmatpush1.msra.mxu0 0.0
    %46 = vmatprep.subr.mxu0 0.0
    %47 = vmatpush1.msra.mxu0 0.0
    %48 = vmatprep.subr.mxu0 0.0
    %49 = vmatpush1.msra.mxu0 0.0
    %50 = vmatprep.subr.mxu0 0.0
    %51 = vmatpush1.msra.mxu0 0.0
    %52 = vmatprep.subr.mxu0 0.0
    %53 = vmatpush1.msra.mxu0 0.0
    %54 = vmatprep.subr.mxu0 0.0
    %55 = vmatpush1.msra.mxu0 0.0
    %56 = vmatprep.subr.mxu0 0.0
    %57 = vmatpush1.msra.mxu0 0.0
    %58 = vmatprep.subr.mxu0 0.0
    %59 = vmatpush1.msra.mxu0 0.0
    %60 = vmatprep.subr.mxu0 0.0
    %61 = vmatpush1.msra.mxu0 0.0
    %62 = vmatprep.subr.mxu0 0.0
    %63 = vmatpush1.msra.mxu0 0.0
    %64 = vmatprep.subr.mxu0 0.0
    %65 = vmatpush1.msra.mxu0 0.0
    %66 = vmatprep.subr.mxu0 0.0
    %67 = vmatpush1.msra.mxu0 0.0
    %68 = vmatprep.subr.mxu0 0.0
    %69 = vmatpush1.msra.mxu0 0.0
    %70 = vmatprep.subr.mxu0 0.0
    %71 = vmatpush1.msra.mxu0 0.0
    %72 = vmatprep.subr.mxu0 0.0
    %73 = vmatpush1.msra.mxu0 0.0
    %74 = vmatprep.subr.mxu0 0.0
    %75 = vmatpush1.msra.mxu0 0.0
    %76 = vmatprep.subr.mxu0 0.0
    %77 = vmatpush1.msra.mxu0 0.0
    %78 = vmatprep.subr.mxu0 0.0
    %79 = vmatpush1.msra.mxu0 0.0
    %80 = vmatprep.subr.mxu0 0.0
    %81 = vmatpush1.msra.mxu0 0.0
    %82 = vmatprep.subr.mxu0 0.0
    %83 = vmatpush1.msra.mxu0 0.0
    %84 = vmatprep.subr.mxu0 0.0
    %85 = vmatpush1.msra.mxu0 0.0
    %86 = vmatprep.subr.mxu0 0.0
    %87 = vmatpush1.msra.mxu0 0.0
    %88 = vmatprep.subr.mxu0 0.0
    %89 = vmatpush1.msra.mxu0 0.0
    %90 = vmatprep.subr.mxu0 0.0
    %91 = vmatpush1.msra.mxu0 0.0
    %92 = vmatprep.subr.mxu0 0.0
    %93 = vmatpush1.msra.mxu0 0.0
    %94 = vmatprep.subr.mxu0 0.0
    %95 = vmatpush1.msra.mxu0 0.0
    %96 = vmatprep.mubr.f32.mxu0 0.0
    %97 = vmatmul.mubr.f32.gmra.mrb[0].mxu0 %v20
    %v98 = vpop.f32.mrb[0].mxu0
    %v99 = vadd.f32 0.0, %v98
    %v100 = vpop.f32.mrb[0].mxu0
    %101 = vmatprep.mubr.f32.mxu0 0.0
    %102 = vmatmul.mubr.f32.gmra.mrb[0].mxu0 %v23
    %v103 = vpop.f32.mrb[0].mxu0
    %v104 = vadd.f32 0.0, %v103
    %v105 = vpop.f32.mrb[0].mxu0
    %106 = vmatprep.mubr.f32.mxu0 0.0
    %107 = vmatmul.mubr.f32.gmra.mrb[0].mxu0 %v26
    %v108 = vpop.f32.mrb[0].mxu0
    %v109 = vadd.f32 0.0, %v108
    %v110 = vpop.f32.mrb[0].mxu0
    %111 = vdwg.mxu0
    %v112 = vtanh.pop %v104
    %v113 = vtanh.pop %v109
    %v115 = vrot.slane %v99, 4
    %v119 = vrot.slane %v112, 4
    %v120 = vrot.slane %v113, 4
    %v121 = vsel %vm13, %v119, %v120
    %v125 = vsel %vm13, %v12, %v115
    %v126 = vsel %vm13, %v115, %v119
    %v127 = vsel %vm13, %v120, 1.0
    %v128 = vld [vmem:[%s1 + $0x18] sm:$0xff]
    %v129 = vld [vmem:[%s1 + $0x20] sm:$0xff]
    %v130 = vld [vmem:[%s1 + $0x28] sm:$0xff]
    %v131 = vld [vmem:[%s1 + $0x30] sm:$0xff]
    %v132 = vld [vmem:[%s1 + $0x38] sm:$0xff]
    %v133 = vld [vmem:[%s1 + $0x40] sm:$0xff]
    %v134 = vld [vmem:[%s1 + $0x48] sm:$0xff]
    %v135 = vld [vmem:[%s1 + $0x50] sm:$0x7f]
    %vm136 = vcmask 236544
    %v138 = vsel %vm136, %v128, 0
    %v141 = vsel %vm136, %v129, 0
    %v144 = vsel %vm136, %v130, 0
    %v147 = vsel %vm136, %v131, 0
    %v150 = vsel %vm136, %v132, 0
    %v153 = vsel %vm136, %v133, 0
    %v156 = vsel %vm136, %v134, 0
    %v159 = vsel %vm136, %v135, 0
    %v162 = vsel %vm28, %v127, 0
    %164 = vmatprep.subr.mxu0 0.0
    %165 = vmatpush1.msra.mxu0 %v125
    %166 = vmatprep.subr.mxu0 0.0
    %167 = vmatpush1.msra.mxu0 %v126
    %168 = vmatprep.subr.mxu0 0.0
    %169 = vmatpush1.msra.mxu0 %v121
    %170 = vmatprep.subr.mxu0 0.0
    %171 = vmatpush1.msra.mxu0 %v162
    %172 = vmatprep.subr.mxu0 0.0
    %173 = vmatpush1.msra.mxu0 0.0
    %174 = vmatprep.subr.mxu0 0.0
    %175 = vmatpush1.msra.mxu0 0.0
    %176 = vmatprep.subr.mxu0 0.0
    %177 = vmatpush1.msra.mxu0 0.0
    %178 = vmatprep.subr.mxu0 0.0
    %179 = vmatpush1.msra.mxu0 0.0
    %180 = vmatprep.subr.mxu0 0.0
    %181 = vmatpush1.msra.mxu0 0.0
    %182 = vmatprep.subr.mxu0 0.0
    %183 = vmatpush1.msra.mxu0 0.0
    %184 = vmatprep.subr.mxu0 0.0
    %185 = vmatpush1.msra.mxu0 0.0
    %186 = vmatprep.subr.mxu0 0.0
    %187 = vmatpush1.msra.mxu0 0.0
    %188 = vmatprep.subr.mxu0 0.0
    %189 = vmatpush1.msra.mxu0 0.0
    %190 = vmatprep.subr.mxu0 0.0
    %191 = vmatpush1.msra.mxu0 0.0
    %192 = vmatprep.subr.mxu0 0.0
    %193 = vmatpush1.msra.mxu0 0.0
    %194 = vmatprep.subr.mxu0 0.0
    %195 = vmatpush1.msra.mxu0 0.0
    %196 = vmatprep.subr.mxu0 0.0
    %197 = vmatpush1.msra.mxu0 0.0
    %198 = vmatprep.subr.mxu0 0.0
    %199 = vmatpush1.msra.mxu0 0.0
    %200 = vmatprep.subr.mxu0 0.0
    %201 = vmatpush1.msra.mxu0 0.0
    %202 = vmatprep.subr.mxu0 0.0
    %203 = vmatpush1.msra.mxu0 0.0
    %204 = vmatprep.subr.mxu0 0.0
    %205 = vmatpush1.msra.mxu0 0.0
    %206 = vmatprep.subr.mxu0 0.0
    %207 = vmatpush1.msra.mxu0 0.0
    %208 = vmatprep.subr.mxu0 0.0
    %209 = vmatpush1.msra.mxu0 0.0
    %210 = vmatprep.subr.mxu0 0.0
    %211 = vmatpush1.msra.mxu0 0.0
    %212 = vmatprep.subr.mxu0 0.0
    %213 = vmatpush1.msra.mxu0 0.0
    %214 = vmatprep.subr.mxu0 0.0
    %215 = vmatpush1.msra.mxu0 0.0
    %216 = vmatprep.subr.mxu0 0.0
    %217 = vmatpush1.msra.mxu0 0.0
    %218 = vmatprep.subr.mxu0 0.0
    %219 = vmatpush1.msra.mxu0 0.0
    %220 = vmatprep.subr.mxu0 0.0
    %221 = vmatpush1.msra.mxu0 0.0
    %222 = vmatprep.subr.mxu0 0.0
    %223 = vmatpush1.msra.mxu0 0.0
    %224 = vmatprep.subr.mxu0 0.0
    %225 = vmatpush1.msra.mxu0 0.0
    %226 = vmatprep.subr.mxu0 0.0
    %227 = vmatpush1.msra.mxu0 0.0
    %228 = vmatprep.mubr.f32.mxu0 0.0
    %229 = vmatmul.mubr.f32.gmra.mrb[0].mxu0 %v138
    %v230 = vpop.f32.mrb[0].mxu0
    %v231 = vadd.f32 0.0, %v230
    %v232 = vpop.f32.mrb[0].mxu0
    %233 = vmatprep.mubr.f32.mxu0 0.0
    %234 = vmatmul.mubr.f32.gmra.mrb[0].mxu0 %v141
    %v235 = vpop.f32.mrb[0].mxu0
    %v236 = vadd.f32 0.0, %v235
    %v237 = vpop.f32.mrb[0].mxu0
    %238 = vmatprep.mubr.f32.mxu0 0.0
    %239 = vmatmul.mubr.f32.gmra.mrb[0].mxu0 %v144
    %v240 = vpop.f32.mrb[0].mxu0
    %v241 = vadd.f32 0.0, %v240
    %v242 = vpop.f32.mrb[0].mxu0
    %243 = vmatprep.mubr.f32.mxu0 0.0
    %244 = vmatmul.mubr.f32.gmra.mrb[0].mxu0 %v147
    %v245 = vpop.f32.mrb[0].mxu0
    %v246 = vadd.f32 0.0, %v245
    %v247 = vpop.f32.mrb[0].mxu0
    %248 = vmatprep.mubr.f32.mxu0 0.0
    %249 = vmatmul.mubr.f32.gmra.mrb[0].mxu0 %v150
    %v250 = vpop.f32.mrb[0].mxu0
    %v251 = vadd.f32 0.0, %v250
    %v252 = vpop.f32.mrb[0].mxu0
    %253 = vmatprep.mubr.f32.mxu0 0.0
    %254 = vmatmul.mubr.f32.gmra.mrb[0].mxu0 %v153
    %v255 = vpop.f32.mrb[0].mxu0
    %v256 = vadd.f32 0.0, %v255
    %v257 = vpop.f32.mrb[0].mxu0
    %258 = vmatprep.mubr.f32.mxu0 0.0
    %259 = vmatmul.mubr.f32.gmra.mrb[0].mxu0 %v156
    %v260 = vpop.f32.mrb[0].mxu0
    %v261 = vadd.f32 0.0, %v260
    %v262 = vpop.f32.mrb[0].mxu0
    %263 = vmatprep.mubr.f32.mxu0 0.0
    %264 = vmatmul.mubr.f32.gmra.mrb[0].mxu0 %v159
    %v265 = vpop.f32.mrb[0].mxu0
    %v266 = vadd.f32 0.0, %v265
    %v267 = vpop.f32.mrb[0].mxu0
    %268 = vdwg.mxu0
    %v269 = vld [vmem:[%s1 + $0x58] sm:$0xff]
    %v270 = vld [vmem:[%s1 + $0x60] sm:$0xff]
    %v271 = vld [vmem:[%s1 + $0x68] sm:$0xff]
    %v272 = vld [vmem:[%s1 + $0x70] sm:$0xff]
    %v273 = vld [vmem:[%s1 + $0x78] sm:$0xff]
    %v274 = vld [vmem:[%s1 + $0x80] sm:$0xff]
    %v275 = vld [vmem:[%s1 + $0x88] sm:$0x3f]
    %vm276 = vcmask 72704
    %v278 = vsel %vm276, %v269, 0
    %v281 = vsel %vm276, %v270, 0
    %vm283 = vcmask 1040384
    %v285 = vsel %vm283, %v236, 0
    %287 = vmatprep.subr.mxu0 0.0
    %288 = vmatpush1.msra.mxu0 %v231
    %289 = vmatprep.subr.mxu0 0.0
    %290 = vmatpush1.msra.mxu0 %v285
    %291 = vmatprep.subr.mxu0 0.0
    %292 = vmatpush1.msra.mxu0 0.0
    %293 = vmatprep.subr.mxu0 0.0
    %294 = vmatpush1.msra.mxu0 0.0
    %295 = vmatprep.subr.mxu0 0.0
    %296 = vmatpush1.msra.mxu0 0.0
    %297 = vmatprep.subr.mxu0 0.0
    %298 = vmatpush1.msra.mxu0 0.0
    %299 = vmatprep.subr.mxu0 0.0
    %300 = vmatpush1.msra.mxu0 0.0
    %301 = vmatprep.subr.mxu0 0.0
    %302 = vmatpush1.msra.mxu0 0.0
    %303 = vmatprep.subr.mxu0 0.0
    %304 = vmatpush1.msra.mxu0 0.0
    %305 = vmatprep.subr.mxu0 0.0
    %306 = vmatpush1.msra.mxu0 0.0
    %307 = vmatprep.subr.mxu0 0.0
    %308 = vmatpush1.msra.mxu0 0.0
    %309 = vmatprep.subr.mxu0 0.0
    %310 = vmatpush1.msra.mxu0 0.0
    %311 = vmatprep.subr.mxu0 0.0
    %312 = vmatpush1.msra.mxu0 0.0
    %313 = vmatprep.subr.mxu0 0.0
    %314 = vmatpush1.msra.mxu0 0.0
    %315 = vmatprep.subr.mxu0 0.0
    %316 = vmatpush1.msra.mxu0 0.0
    %317 = vmatprep.subr.mxu0 0.0
    %318 = vmatpush1.msra.mxu0 0.0
    %319 = vmatprep.subr.mxu0 0.0
    %320 = vmatpush1.msra.mxu0 0.0
    %321 = vmatprep.subr.mxu0 0.0
    %322 = vmatpush1.msra.mxu0 0.0
    %323 = vmatprep.subr.mxu0 0.0
    %324 = vmatpush1.msra.mxu0 0.0
    %325 = vmatprep.subr.mxu0 0.0
    %326 = vmatpush1.msra.mxu0 0.0
    %327 = vmatprep.subr.mxu0 0.0
    %328 = vmatpush1.msra.mxu0 0.0
    %329 = vmatprep.subr.mxu0 0.0
    %330 = vmatpush1.msra.mxu0 0.0
    %331 = vmatprep.subr.mxu0 0.0
    %332 = vmatpush1.msra.mxu0 0.0
    %333 = vmatprep.subr.mxu0 0.0
    %334 = vmatpush1.msra.mxu0 0.0
    %335 = vmatprep.subr.mxu0 0.0
    %336 = vmatpush1.msra.mxu0 0.0
    %337 = vmatprep.subr.mxu0 0.0
    %338 = vmatpush1.msra.mxu0 0.0
    %339 = vmatprep.subr.mxu0 0.0
    %340 = vmatpush1.msra.mxu0 0.0
    %341 = vmatprep.subr.mxu0 0.0
    %342 = vmatpush1.msra.mxu0 0.0
    %343 = vmatprep.subr.mxu0 0.0
    %344 = vmatpush1.msra.mxu0 0.0
    %345 = vmatprep.subr.mxu0 0.0
    %346 = vmatpush1.msra.mxu0 0.0
    %347 = vmatprep.subr.mxu0 0.0
    %348 = vmatpush1.msra.mxu0 0.0
    %349 = vmatprep.subr.mxu0 0.0
    %350 = vmatpush1.msra.mxu0 0.0
    %351 = vmatprep.mubr.f32.mxu0 0.0
    %352 = vmatmul.mubr.f32.gmra.mrb[0].mxu0 %v278
    %v353 = vpop.f32.mrb[0].mxu0
    %v354 = vadd.f32 0.0, %v353
    %v355 = vpop.f32.mrb[0].mxu0
    %356 = vmatprep.mubr.f32.mxu0 0.0
    %357 = vmatmul.mubr.f32.gmra.mrb[0].mxu0 %v281
    %v358 = vpop.f32.mrb[0].mxu0
    %v359 = vadd.f32 0.0, %v358
    %v360 = vpop.f32.mrb[0].mxu0
    %361 = vdwg.mxu0
    %v364 = vrot.slane %v354, 7
    %v365 = vrot.slane %v359, 7
    %v366 = vsel %vm283, %v364, %v365
    %v369 = vadd.f32 %v236, %v364
    %v370 = vadd.f32 %v241, %v366
    %vm372 = vcmask 1046528
    %v373 = vrot.slane %v270, 1
    %v374 = vrot.slane %v271, 1
    %v375 = vsel %vm372, %v373, %v374
    %v378 = vrot.slane %v369, 1
    %v379 = vrot.slane %v370, 1
    %v380 = vsel %vm372, %v378, %v379
    %v382 = vsel %vm276, %v375, 0
    %v384 = vsel %vm276, %v374, 0
    %v386 = vsel %vm283, %v379, 0
    %388 = vmatprep.subr.mxu0 0.0
    %389 = vmatpush1.msra.mxu0 %v380
    %390 = vmatprep.subr.mxu0 0.0
    %391 = vmatpush1.msra.mxu0 %v386
    %392 = vmatprep.subr.mxu0 0.0
    %393 = vmatpush1.msra.mxu0 0.0
    %394 = vmatprep.subr.mxu0 0.0
    %395 = vmatpush1.msra.mxu0 0.0
    %396 = vmatprep.subr.mxu0 0.0
    %397 = vmatpush1.msra.mxu0 0.0
    %398 = vmatprep.subr.mxu0 0.0
    %399 = vmatpush1.msra.mxu0 0.0
    %400 = vmatprep.subr.mxu0 0.0
    %401 = vmatpush1.msra.mxu0 0.0
    %402 = vmatprep.subr.mxu0 0.0
    %403 = vmatpush1.msra.mxu0 0.0
    %404 = vmatprep.subr.mxu0 0.0
    %405 = vmatpush1.msra.mxu0 0.0
    %406 = vmatprep.subr.mxu0 0.0
    %407 = vmatpush1.msra.mxu0 0.0
    %408 = vmatprep.subr.mxu0 0.0
    %409 = vmatpush1.msra.mxu0 0.0
    %410 = vmatprep.subr.mxu0 0.0
    %411 = vmatpush1.msra.mxu0 0.0
    %412 = vmatprep.subr.mxu0 0.0
    %413 = vmatpush1.msra.mxu0 0.0
    %414 = vmatprep.subr.mxu0 0.0
    %415 = vmatpush1.msra.mxu0 0.0
    %416 = vmatprep.subr.mxu0 0.0
    %417 = vmatpush1.msra.mxu0 0.0
    %418 = vmatprep.subr.mxu0 0.0
    %419 = vmatpush1.msra.mxu0 0.0
    %420 = vmatprep.subr.mxu0 0.0
    %421 = vmatpush1.msra.mxu0 0.0
    %422 = vmatprep.subr.mxu0 0.0
    %423 = vmatpush1.msra.mxu0 0.0
    %424 = vmatprep.subr.mxu0 0.0
    %425 = vmatpush1.msra.mxu0 0.0
    %426 = vmatprep.subr.mxu0 0.0
    %427 = vmatpush1.msra.mxu0 0.0
    %428 = vmatprep.subr.mxu0 0.0
    %429 = vmatpush1.msra.mxu0 0.0
    %430 = vmatprep.subr.mxu0 0.0
    %431 = vmatpush1.msra.mxu0 0.0
    %432 = vmatprep.subr.mxu0 0.0
    %433 = vmatpush1.msra.mxu0 0.0
    %434 = vmatprep.subr.mxu0 0.0
    %435 = vmatpush1.msra.mxu0 0.0
    %436 = vmatprep.subr.mxu0 0.0
    %437 = vmatpush1.msra.mxu0 0.0
    %438 = vmatprep.subr.mxu0 0.0
    %439 = vmatpush1.msra.mxu0 0.0
    %440 = vmatprep.subr.mxu0 0.0
    %441 = vmatpush1.msra.mxu0 0.0
    %442 = vmatprep.subr.mxu0 0.0
    %443 = vmatpush1.msra.mxu0 0.0
    %444 = vmatprep.subr.mxu0 0.0
    %445 = vmatpush1.msra.mxu0 0.0
    %446 = vmatprep.subr.mxu0 0.0
    %447 = vmatpush1.msra.mxu0 0.0
    %448 = vmatprep.subr.mxu0 0.0
    %449 = vmatpush1.msra.mxu0 0.0
    %450 = vmatprep.subr.mxu0 0.0
    %451 = vmatpush1.msra.mxu0 0.0
    %452 = vmatprep.mubr.f32.mxu0 0.0
    %453 = vmatmul.mubr.f32.gmra.mrb[0].mxu0 %v382
    %v454 = vpop.f32.mrb[0].mxu0
    %v455 = vadd.f32 0.0, %v454
    %v456 = vpop.f32.mrb[0].mxu0
    %457 = vmatprep.mubr.f32.mxu0 0.0
    %458 = vmatmul.mubr.f32.gmra.mrb[0].mxu0 %v384
    %v459 = vpop.f32.mrb[0].mxu0
    %v460 = vadd.f32 0.0, %v459
    %v461 = vpop.f32.mrb[0].mxu0
    %462 = vdwg.mxu0
    %vm465 = vcmask 1041408
    %v466 = vrot.slane %v455, 6
    %v467 = vrot.slane %v460, 6
    %v468 = vsel %vm465, %v466, %v467
    %v471 = vadd.f32 %v241, %v466
    %v472 = vadd.f32 %v246, %v468
    %vm474 = vcmask 1045504
    %v475 = vrot.slane %v271, 2
    %v476 = vrot.slane %v272, 2
    %v477 = vsel %vm474, %v475, %v476
    %v480 = vrot.slane %v471, 2
    %v481 = vrot.slane %v472, 2
    %v482 = vsel %vm474, %v480, %v481
    %v484 = vsel %vm276, %v477, 0
    %v486 = vsel %vm276, %v476, 0
    %v488 = vsel %vm283, %v481, 0
    %490 = vmatprep.subr.mxu0 0.0
    %491 = vmatpush1.msra.mxu0 %v482
    %492 = vmatprep.subr.mxu0 0.0
    %493 = vmatpush1.msra.mxu0 %v488
    %494 = vmatprep.subr.mxu0 0.0
    %495 = vmatpush1.msra.mxu0 0.0
    %496 = vmatprep.subr.mxu0 0.0
    %497 = vmatpush1.msra.mxu0 0.0
    %498 = vmatprep.subr.mxu0 0.0
    %499 = vmatpush1.msra.mxu0 0.0
    %500 = vmatprep.subr.mxu0 0.0
    %501 = vmatpush1.msra.mxu0 0.0
    %502 = vmatprep.subr.mxu0 0.0
    %503 = vmatpush1.msra.mxu0 0.0
    %504 = vmatprep.subr.mxu0 0.0
    %505 = vmatpush1.msra.mxu0 0.0
    %506 = vmatprep.subr.mxu0 0.0
    %507 = vmatpush1.msra.mxu0 0.0
    %508 = vmatprep.subr.mxu0 0.0
    %509 = vmatpush1.msra.mxu0 0.0
    %510 = vmatprep.subr.mxu0 0.0
    %511 = vmatpush1.msra.mxu0 0.0
    %512 = vmatprep.subr.mxu0 0.0
    %513 = vmatpush1.msra.mxu0 0.0
    %514 = vmatprep.subr.mxu0 0.0
    %515 = vmatpush1.msra.mxu0 0.0
    %516 = vmatprep.subr.mxu0 0.0
    %517 = vmatpush1.msra.mxu0 0.0
    %518 = vmatprep.subr.mxu0 0.0
    %519 = vmatpush1.msra.mxu0 0.0
    %520 = vmatprep.subr.mxu0 0.0
    %521 = vmatpush1.msra.mxu0 0.0
    %522 = vmatprep.subr.mxu0 0.0
    %523 = vmatpush1.msra.mxu0 0.0
    %524 = vmatprep.subr.mxu0 0.0
    %525 = vmatpush1.msra.mxu0 0.0
    %526 = vmatprep.subr.mxu0 0.0
    %527 = vmatpush1.msra.mxu0 0.0
    %528 = vmatprep.subr.mxu0 0.0
    %529 = vmatpush1.msra.mxu0 0.0
    %530 = vmatprep.subr.mxu0 0.0
    %531 = vmatpush1.msra.mxu0 0.0
    %532 = vmatprep.subr.mxu0 0.0
    %533 = vmatpush1.msra.mxu0 0.0
    %534 = vmatprep.subr.mxu0 0.0
    %535 = vmatpush1.msra.mxu0 0.0
    %536 = vmatprep.subr.mxu0 0.0
    %537 = vmatpush1.msra.mxu0 0.0
    %538 = vmatprep.subr.mxu0 0.0
    %539 = vmatpush1.msra.mxu0 0.0
    %540 = vmatprep.subr.mxu0 0.0
    %541 = vmatpush1.msra.mxu0 0.0
    %542 = vmatprep.subr.mxu0 0.0
    %543 = vmatpush1.msra.mxu0 0.0
    %544 = vmatprep.subr.mxu0 0.0
    %545 = vmatpush1.msra.mxu0 0.0
    %546 = vmatprep.subr.mxu0 0.0
    %547 = vmatpush1.msra.mxu0 0.0
    %548 = vmatprep.subr.mxu0 0.0
    %549 = vmatpush1.msra.mxu0 0.0
    %550 = vmatprep.subr.mxu0 0.0
    %551 = vmatpush1.msra.mxu0 0.0
    %552 = vmatprep.subr.mxu0 0.0
    %553 = vmatpush1.msra.mxu0 0.0
    %554 = vmatprep.mubr.f32.mxu0 0.0
    %555 = vmatmul.mubr.f32.gmra.mrb[0].mxu0 %v484
    %v556 = vpop.f32.mrb[0].mxu0
    %v557 = vadd.f32 0.0, %v556
    %v558 = vpop.f32.mrb[0].mxu0
    %559 = vmatprep.mubr.f32.mxu0 0.0
    %560 = vmatmul.mubr.f32.gmra.mrb[0].mxu0 %v486
    %v561 = vpop.f32.mrb[0].mxu0
    %v562 = vadd.f32 0.0, %v561
    %v563 = vpop.f32.mrb[0].mxu0
    %564 = vdwg.mxu0
    %vm567 = vcmask 1042432
    %v568 = vrot.slane %v557, 5
    %v569 = vrot.slane %v562, 5
    %v570 = vsel %vm567, %v568, %v569
    %v573 = vadd.f32 %v246, %v568
    %v574 = vadd.f32 %v251, %v570
    %v576 = vrot.slane %v272, 3
    %v577 = vrot.slane %v273, 3
    %v578 = vsel %vm28, %v576, %v577
    %v581 = vrot.slane %v573, 3
    %v582 = vrot.slane %v574, 3
    %v583 = vsel %vm28, %v581, %v582
    %v585 = vsel %vm276, %v578, 0
    %v587 = vsel %vm276, %v577, 0
    %v589 = vsel %vm283, %v582, 0
    %591 = vmatprep.subr.mxu0 0.0
    %592 = vmatpush1.msra.mxu0 %v583
    %593 = vmatprep.subr.mxu0 0.0
    %594 = vmatpush1.msra.mxu0 %v589
    %595 = vmatprep.subr.mxu0 0.0
    %596 = vmatpush1.msra.mxu0 0.0
    %597 = vmatprep.subr.mxu0 0.0
    %598 = vmatpush1.msra.mxu0 0.0
    %599 = vmatprep.subr.mxu0 0.0
    %600 = vmatpush1.msra.mxu0 0.0
    %601 = vmatprep.subr.mxu0 0.0
    %602 = vmatpush1.msra.mxu0 0.0
    %603 = vmatprep.subr.mxu0 0.0
    %604 = vmatpush1.msra.mxu0 0.0
    %605 = vmatprep.subr.mxu0 0.0
    %606 = vmatpush1.msra.mxu0 0.0
    %607 = vmatprep.subr.mxu0 0.0
    %608 = vmatpush1.msra.mxu0 0.0
    %609 = vmatprep.subr.mxu0 0.0
    %610 = vmatpush1.msra.mxu0 0.0
    %611 = vmatprep.subr.mxu0 0.0
    %612 = vmatpush1.msra.mxu0 0.0
    %613 = vmatprep.subr.mxu0 0.0
    %614 = vmatpush1.msra.mxu0 0.0
    %615 = vmatprep.subr.mxu0 0.0
    %616 = vmatpush1.msra.mxu0 0.0
    %617 = vmatprep.subr.mxu0 0.0
    %618 = vmatpush1.msra.mxu0 0.0
    %619 = vmatprep.subr.mxu0 0.0
    %620 = vmatpush1.msra.mxu0 0.0
    %621 = vmatprep.subr.mxu0 0.0
    %622 = vmatpush1.msra.mxu0 0.0
    %623 = vmatprep.subr.mxu0 0.0
    %624 = vmatpush1.msra.mxu0 0.0
    %625 = vmatprep.subr.mxu0 0.0
    %626 = vmatpush1.msra.mxu0 0.0
    %627 = vmatprep.subr.mxu0 0.0
    %628 = vmatpush1.msra.mxu0 0.0
    %629 = vmatprep.subr.mxu0 0.0
    %630 = vmatpush1.msra.mxu0 0.0
    %631 = vmatprep.subr.mxu0 0.0
    %632 = vmatpush1.msra.mxu0 0.0
    %633 = vmatprep.subr.mxu0 0.0
    %634 = vmatpush1.msra.mxu0 0.0
    %635 = vmatprep.subr.mxu0 0.0
    %636 = vmatpush1.msra.mxu0 0.0
    %637 = vmatprep.subr.mxu0 0.0
    %638 = vmatpush1.msra.mxu0 0.0
    %639 = vmatprep.subr.mxu0 0.0
    %640 = vmatpush1.msra.mxu0 0.0
    %641 = vmatprep.subr.mxu0 0.0
    %642 = vmatpush1.msra.mxu0 0.0
    %643 = vmatprep.subr.mxu0 0.0
    %644 = vmatpush1.msra.mxu0 0.0
    %645 = vmatprep.subr.mxu0 0.0
    %646 = vmatpush1.msra.mxu0 0.0
    %647 = vmatprep.subr.mxu0 0.0
    %648 = vmatpush1.msra.mxu0 0.0
    %649 = vmatprep.subr.mxu0 0.0
    %650 = vmatpush1.msra.mxu0 0.0
    %651 = vmatprep.subr.mxu0 0.0
    %652 = vmatpush1.msra.mxu0 0.0
    %653 = vmatprep.subr.mxu0 0.0
    %654 = vmatpush1.msra.mxu0 0.0
    %655 = vmatprep.mubr.f32.mxu0 0.0
    %656 = vmatmul.mubr.f32.gmra.mrb[0].mxu0 %v585
    %v657 = vpop.f32.mrb[0].mxu0
    %v658 = vadd.f32 0.0, %v657
    %v659 = vpop.f32.mrb[0].mxu0
    %660 = vmatprep.mubr.f32.mxu0 0.0
    %661 = vmatmul.mubr.f32.gmra.mrb[0].mxu0 %v587
    %v662 = vpop.f32.mrb[0].mxu0
    %v663 = vadd.f32 0.0, %v662
    %v664 = vpop.f32.mrb[0].mxu0
    %665 = vdwg.mxu0
    %v668 = vrot.slane %v658, 4
    %v669 = vrot.slane %v663, 4
    %v670 = vsel %vm13, %v668, %v669
    %v673 = vadd.f32 %v251, %v668
    %v674 = vadd.f32 %v256, %v670
    %v676 = vrot.slane %v273, 4
    %v677 = vrot.slane %v274, 4
    %v678 = vsel %vm13, %v676, %v677
    %v681 = vrot.slane %v673, 4
    %v682 = vrot.slane %v674, 4
    %v683 = vsel %vm13, %v681, %v682
    %v685 = vsel %vm276, %v678, 0
    %v687 = vsel %vm276, %v677, 0
    %v689 = vsel %vm283, %v682, 0
    %691 = vmatprep.subr.mxu0 0.0
    %692 = vmatpush1.msra.mxu0 %v683
    %693 = vmatprep.subr.mxu0 0.0
    %694 = vmatpush1.msra.mxu0 %v689
    %695 = vmatprep.subr.mxu0 0.0
    %696 = vmatpush1.msra.mxu0 0.0
    %697 = vmatprep.subr.mxu0 0.0
    %698 = vmatpush1.msra.mxu0 0.0
    %699 = vmatprep.subr.mxu0 0.0
    %700 = vmatpush1.msra.mxu0 0.0
    %701 = vmatprep.subr.mxu0 0.0
    %702 = vmatpush1.msra.mxu0 0.0
    %703 = vmatprep.subr.mxu0 0.0
    %704 = vmatpush1.msra.mxu0 0.0
    %705 = vmatprep.subr.mxu0 0.0
    %706 = vmatpush1.msra.mxu0 0.0
    %707 = vmatprep.subr.mxu0 0.0
    %708 = vmatpush1.msra.mxu0 0.0
    %709 = vmatprep.subr.mxu0 0.0
    %710 = vmatpush1.msra.mxu0 0.0
    %711 = vmatprep.subr.mxu0 0.0
    %712 = vmatpush1.msra.mxu0 0.0
    %713 = vmatprep.subr.mxu0 0.0
    %714 = vmatpush1.msra.mxu0 0.0
    %715 = vmatprep.subr.mxu0 0.0
    %716 = vmatpush1.msra.mxu0 0.0
    %717 = vmatprep.subr.mxu0 0.0
    %718 = vmatpush1.msra.mxu0 0.0
    %719 = vmatprep.subr.mxu0 0.0
    %720 = vmatpush1.msra.mxu0 0.0
    %721 = vmatprep.subr.mxu0 0.0
    %722 = vmatpush1.msra.mxu0 0.0
    %723 = vmatprep.subr.mxu0 0.0
    %724 = vmatpush1.msra.mxu0 0.0
    %725 = vmatprep.subr.mxu0 0.0
    %726 = vmatpush1.msra.mxu0 0.0
    %727 = vmatprep.subr.mxu0 0.0
    %728 = vmatpush1.msra.mxu0 0.0
    %729 = vmatprep.subr.mxu0 0.0
    %730 = vmatpush1.msra.mxu0 0.0
    %731 = vmatprep.subr.mxu0 0.0
    %732 = vmatpush1.msra.mxu0 0.0
    %733 = vmatprep.subr.mxu0 0.0
    %734 = vmatpush1.msra.mxu0 0.0
    %735 = vmatprep.subr.mxu0 0.0
    %736 = vmatpush1.msra.mxu0 0.0
    %737 = vmatprep.subr.mxu0 0.0
    %738 = vmatpush1.msra.mxu0 0.0
    %739 = vmatprep.subr.mxu0 0.0
    %740 = vmatpush1.msra.mxu0 0.0
    %741 = vmatprep.subr.mxu0 0.0
    %742 = vmatpush1.msra.mxu0 0.0
    %743 = vmatprep.subr.mxu0 0.0
    %744 = vmatpush1.msra.mxu0 0.0
    %745 = vmatprep.subr.mxu0 0.0
    %746 = vmatpush1.msra.mxu0 0.0
    %747 = vmatprep.subr.mxu0 0.0
    %748 = vmatpush1.msra.mxu0 0.0
    %749 = vmatprep.subr.mxu0 0.0
    %750 = vmatpush1.msra.mxu0 0.0
    %751 = vmatprep.subr.mxu0 0.0
    %752 = vmatpush1.msra.mxu0 0.0
    %753 = vmatprep.subr.mxu0 0.0
    %754 = vmatpush1.msra.mxu0 0.0
    %755 = vmatprep.mubr.f32.mxu0 0.0
    %756 = vmatmul.mubr.f32.gmra.mrb[0].mxu0 %v685
    %v757 = vpop.f32.mrb[0].mxu0
    %v758 = vadd.f32 0.0, %v757
    %v759 = vpop.f32.mrb[0].mxu0
    %760 = vmatprep.mubr.f32.mxu0 0.0
    %761 = vmatmul.mubr.f32.gmra.mrb[0].mxu0 %v687
    %v762 = vpop.f32.mrb[0].mxu0
    %v763 = vadd.f32 0.0, %v762
    %v764 = vpop.f32.mrb[0].mxu0
    %765 = vdwg.mxu0
    %v768 = vrot.slane %v758, 3
    %v769 = vrot.slane %v763, 3
    %v770 = vsel %vm28, %v768, %v769
    %v773 = vadd.f32 %v256, %v768
    %v774 = vadd.f32 %v261, %v770
    %v776 = vrot.slane %v274, 5
    %v777 = vrot.slane %v275, 5
    %v778 = vsel %vm567, %v776, %v777
    %v781 = vrot.slane %v773, 5
    %v782 = vrot.slane %v774, 5
    %v783 = vsel %vm567, %v781, %v782
    %v785 = vsel %vm276, %v778, 0
    %v787 = vsel %vm276, %v777, 0
    %v789 = vsel %vm283, %v782, 0
    %791 = vmatprep.subr.mxu0 0.0
    %792 = vmatpush1.msra.mxu0 %v783
    %793 = vmatprep.subr.mxu0 0.0
    %794 = vmatpush1.msra.mxu0 %v789
    %795 = vmatprep.subr.mxu0 0.0
    %796 = vmatpush1.msra.mxu0 0.0
    %797 = vmatprep.subr.mxu0 0.0
    %798 = vmatpush1.msra.mxu0 0.0
    %799 = vmatprep.subr.mxu0 0.0
    %800 = vmatpush1.msra.mxu0 0.0
    %801 = vmatprep.subr.mxu0 0.0
    %802 = vmatpush1.msra.mxu0 0.0
    %803 = vmatprep.subr.mxu0 0.0
    %804 = vmatpush1.msra.mxu0 0.0
    %805 = vmatprep.subr.mxu0 0.0
    %806 = vmatpush1.msra.mxu0 0.0
    %807 = vmatprep.subr.mxu0 0.0
    %808 = vmatpush1.msra.mxu0 0.0
    %809 = vmatprep.subr.mxu0 0.0
    %810 = vmatpush1.msra.mxu0 0.0
    %811 = vmatprep.subr.mxu0 0.0
    %812 = vmatpush1.msra.mxu0 0.0
    %813 = vmatprep.subr.mxu0 0.0
    %814 = vmatpush1.msra.mxu0 0.0
    %815 = vmatprep.subr.mxu0 0.0
    %816 = vmatpush1.msra.mxu0 0.0
    %817 = vmatprep.subr.mxu0 0.0
    %818 = vmatpush1.msra.mxu0 0.0
    %819 = vmatprep.subr.mxu0 0.0
    %820 = vmatpush1.msra.mxu0 0.0
    %821 = vmatprep.subr.mxu0 0.0
    %822 = vmatpush1.msra.mxu0 0.0
    %823 = vmatprep.subr.mxu0 0.0
    %824 = vmatpush1.msra.mxu0 0.0
    %825 = vmatprep.subr.mxu0 0.0
    %826 = vmatpush1.msra.mxu0 0.0
    %827 = vmatprep.subr.mxu0 0.0
    %828 = vmatpush1.msra.mxu0 0.0
    %829 = vmatprep.subr.mxu0 0.0
    %830 = vmatpush1.msra.mxu0 0.0
    %831 = vmatprep.subr.mxu0 0.0
    %832 = vmatpush1.msra.mxu0 0.0
    %833 = vmatprep.subr.mxu0 0.0
    %834 = vmatpush1.msra.mxu0 0.0
    %835 = vmatprep.subr.mxu0 0.0
    %836 = vmatpush1.msra.mxu0 0.0
    %837 = vmatprep.subr.mxu0 0.0
    %838 = vmatpush1.msra.mxu0 0.0
    %839 = vmatprep.subr.mxu0 0.0
    %840 = vmatpush1.msra.mxu0 0.0
    %841 = vmatprep.subr.mxu0 0.0
    %842 = vmatpush1.msra.mxu0 0.0
    %843 = vmatprep.subr.mxu0 0.0
    %844 = vmatpush1.msra.mxu0 0.0
    %845 = vmatprep.subr.mxu0 0.0
    %846 = vmatpush1.msra.mxu0 0.0
    %847 = vmatprep.subr.mxu0 0.0
    %848 = vmatpush1.msra.mxu0 0.0
    %849 = vmatprep.subr.mxu0 0.0
    %850 = vmatpush1.msra.mxu0 0.0
    %851 = vmatprep.subr.mxu0 0.0
    %852 = vmatpush1.msra.mxu0 0.0
    %853 = vmatprep.subr.mxu0 0.0
    %854 = vmatpush1.msra.mxu0 0.0
    %855 = vmatprep.mubr.f32.mxu0 0.0
    %856 = vmatmul.mubr.f32.gmra.mrb[0].mxu0 %v785
    %v857 = vpop.f32.mrb[0].mxu0
    %v858 = vadd.f32 0.0, %v857
    %v859 = vpop.f32.mrb[0].mxu0
    %860 = vmatprep.mubr.f32.mxu0 0.0
    %861 = vmatmul.mubr.f32.gmra.mrb[0].mxu0 %v787
    %v862 = vpop.f32.mrb[0].mxu0
    %v863 = vadd.f32 0.0, %v862
    %v864 = vpop.f32.mrb[0].mxu0
    %865 = vdwg.mxu0
    %v868 = vrot.slane %v858, 2
    %v869 = vrot.slane %v863, 2
    %v870 = vsel %vm474, %v868, %v869
    %v872 = vadd.f32 %v266, %v870
    %v874 = vrot.slane %v472, 1
    %v876 = vrot.slane %v574, 1
    %v878 = vrot.slane %v674, 1
    %v880 = vrot.slane %v774, 1
    %v883 = vrot.slane %v872, 1
    %v885 = vsel %vm283, %v379, %v874
    %v886 = vsel %vm465, %v885, %v876
    %v887 = vsel %vm567, %v886, %v878
    %v888 = vsel %vm13, %v887, %v880
    %v889 = vsel %vm28, %v888, %v883
    %vm890 = vcmask 62464
    %891 = vst.msk [vmem:[#allocation2] sm:$0x3f] %vm890, %v889
    // Predicated region
    $region10: #{tpu_custom_call.1} parent=1 // pred_check
      _
    $region11: #{tpu_custom_call.1} parent=1 // pred_check_branch
      %893 = sbr.rel (0) target = $region13
    $region12: #{tpu_custom_call.1} parent=1 // pred_region
      %s895 = ssub.s32 128, 128
      %896 = vsyncadd [#allocation3], %s895
      %s898 = sshll.u32 [#allocation2], 4
      %s899 = int_to_ptr.vmem [resolvable:$true] %s898
      %901 = dma.vmem_to_hbm [thread:$0]  %s899, 128, %s2, [#allocation3]
    $region13: #{tpu_custom_call.1} parent=1 // pred_fallthru
      _
    // Predicated region
    $region14: #{tpu_custom_call.1} parent=1 // pred_check
      _
    $region15: #{tpu_custom_call.1} parent=1 // pred_check_branch
      %903 = sbr.rel (0) target = $region17
    $region16: #{tpu_custom_call.1} parent=1 // pred_region
      %904 = dma.done [#allocation3], 128
    $region17: #{tpu_custom_call.1} parent=1 // pred_fallthru
      _
    %905 = vsyncpa [#allocation3], 1

</llo_original>
